<compile_context>
chip_gen: v7x
topology: tpu7x:2x2x1
jax: 0.10.0
libtpu: 0.0.40
codegen_flags: <defaults>
</compile_context>

<pallas_src>
import jax
import jax.numpy as jnp
from jax import lax
from jax.experimental import pallas as pl
from jax.experimental.pallas import tpu as pltpu


def gatenet_kernel(x_ref, wd_ref, bd_ref, out_ref):
    """x_ref: (TM, K) native dtype; wd_ref: (1, K) = (w0 - w1) in x dtype;
    bd_ref: SMEM f32[1] = (b0 - b1); out_ref: (2, TM) gate probabilities."""
    # Single-row NT matmul on the MXU: d = wd @ x^T -> (1, TM). Contracting the
    # last dim of both operands is the same pattern the flash-attention kernels
    # use (q @ k^T); Mosaic feeds the transposed operand to the MXU directly,
    # so the big x tile is not transposed through the XLU.
    d = lax.dot_general(
        wd_ref[...], x_ref[...],
        dimension_numbers=(((1,), (1,)), ((), ())),
        preferred_element_type=jnp.float32,
    )
    d = d + bd_ref[0]                          # scalar bias delta from SMEM

    # G == 2 softmax == sigmoid: p0 = sigmoid(l0 - l1); p1 = 1 - p0 (sums to 1
    # exactly). Exact reciprocal: approx=True would exceed the 1e-5 tolerance.
    p0 = pl.reciprocal(1.0 + jnp.exp(-d))      # (1, TM)
    p1 = 1.0 - p0

    # One full-block lane-dense store (M on the 128-lane axis); avoids the
    # per-row sublane-masked vst.msk of the previous revision.
    out_ref[...] = jnp.concatenate([p0, p1], axis=0).astype(out_ref.dtype)


def _round_up(x, m):
    return ((x + m - 1) // m) * m


def _choose_tile_m(m, k, itemsize):
    """Pick TM (multiple of 128).

    Real VMEM bytes of an x tile are TM * round_up(K, 128) * itemsize (lane
    padding), and the pipeline double-buffers it. Target ~4 MiB of real bytes
    per grid step (amortizes the ~0.35 us/step overhead on every generation and
    keeps the step DMA >> overhead even at v7x's ~3.2 TB/s), cap 8 MiB per
    buffer, and clamp so the grid keeps >= ~4 steps (>= 2 per v7x TensorCore
    under dimension_semantics=("parallel",)).
    """
    k_pad = max(_round_up(k, 128), 128)
    target = 4 << 20
    cap = 8 << 20
    tm = 128
    while tm * k_pad * itemsize < target and tm < (1 << 17):
        tm *= 2
    while tm * k_pad * itemsize > cap and tm > 128:
        tm //= 2
    quarter = max(128, _round_up(pl.cdiv(m, 4), 128))
    return max(128, min(tm, quarter))


def gatenet_probs_gm(x2d, weight, bias):
    """Gate probabilities in (G=2, M) lane-dense layout (no trailing transpose).

    x2d: (M, K); weight: (2, K); bias: (2,). A fused consumer (the AdaptiveFFN
    kernel) should take this layout directly.
    """
    M, K = x2d.shape
    assert weight.shape[0] == 2 and weight.shape[1] == K
    dtype = x2d.dtype
    itemsize = jnp.dtype(dtype).itemsize

    # G == 2: only the logit difference matters for the softmax.
    wd = (weight[0] - weight[1]).reshape(1, K).astype(dtype)
    bd = (bias[0] - bias[1]).reshape(1).astype(jnp.float32)

    TM = _choose_tile_m(M, K, itemsize)
    grid = (pl.cdiv(M, TM),)

    # VMEM budget from real (lane-padded) tile sizes. <= 48 MiB is safe on
    # v7x's 64 MiB VMEM and leaves ample headroom on 128 MiB v5e/v6e parts.
    k_pad = max(_round_up(K, 128), 128)
    x_buf = TM * k_pad * itemsize               # one x buffer (double-buffered)
    out_buf = 8 * TM * itemsize                 # (2, TM) padded to 8 sublanes
    w_buf = 8 * k_pad * itemsize
    need = 2 * x_buf + 2 * out_buf + w_buf
    vmem_limit = int(min(max(need * 3 // 2 + (4 << 20), 16 << 20), 48 << 20))

    return pl.pallas_call(
        gatenet_kernel,
        out_shape=jax.ShapeDtypeStruct((2, M), dtype),
        grid_spec=pltpu.PrefetchScalarGridSpec(
            num_scalar_prefetch=0,
            grid=grid,
            in_specs=[
                # x streams through VMEM; the ragged last block reads (and
                # discards) rows past M, so no wrapper-side jnp.pad / extra HBM
                # pass is needed. If the DMA is still exposed on v7x, add
                # pipeline_mode=pl.Buffered(3) here.
                pl.BlockSpec((TM, K), lambda i: (i, 0)),
                pl.BlockSpec((1, K), lambda i: (0, 0)),             # wd resident
                pl.BlockSpec(memory_space=pltpu.MemorySpace.SMEM),  # bd scalar
            ],
            out_specs=pl.BlockSpec((2, TM), lambda i: (0, i)),
        ),
        compiler_params=pltpu.CompilerParams(
            dimension_semantics=("parallel",),   # megacore-shard M on v7x
            vmem_limit_bytes=vmem_limit,
        ),
    )(x2d, wd, bd)


def gatenet_forward(inputs, weight, bias):
    """Module-parity entry point: inputs (..., K) -> probs (..., 2)."""
    lead_shape = inputs.shape[:-1]
    K = inputs.shape[-1]
    M = 1
    for d in lead_shape:
        M *= d
    x2d = inputs.reshape(M, K)
    out_gm = gatenet_probs_gm(x2d, weight, bias)          # (2, M)
    # Tiny (2, M) transpose only; a fused consumer should use out_gm directly.
    return out_gm.T.reshape(*lead_shape, 2)


if __name__ == "__main__":
    gate_num = 2
    init_identity_bias = 3.0

    def run_case(case_key, lead_shape, in_features):
        k_x, k_w = jax.random.split(case_key)
        # Deterministic synthetic params (the reference nn.Parameter is
        # uninitialized, so we fill the weight with a deterministic normal).
        weight = jax.random.normal(k_w, (gate_num, in_features), dtype=jnp.float32) * 0.02
        bias = jnp.array([init_identity_bias] + [0.0] * (gate_num - 1), dtype=jnp.float32)
        inputs = jax.random.normal(k_x, (*lead_shape, in_features), dtype=jnp.float32)

        prob = jax.block_until_ready(gatenet_forward(inputs, weight, bias))

        # Pure-JAX reference
        ref_logits = inputs @ weight.T + bias
        ref_prob = jax.nn.softmax(ref_logits, axis=-1)
        assert prob.shape == (*lead_shape, gate_num)
        assert jnp.allclose(prob, ref_prob, atol=1e-5, rtol=1e-5)
        assert jnp.allclose(jnp.sum(prob, axis=-1), 1.0, atol=1e-6)

    key = jax.random.PRNGKey(0)
    k1, k2 = jax.random.split(key)
    run_case(k1, (2, 8), 32)     # batch=2, seq=8, d_model=32 (module-scale demo)
    run_case(k2, (3, 50), 64)    # M=150: exercises the ragged (no-pad) tail path

    print("KERNEL_OK")
</pallas_src>

<mosaic_0001>
module attributes {stable_mosaic.version = 11 : i64} {
  func.func @gatenet_kernel(%arg0: i32, %arg1: memref<128x32xf32, #tpu.memory_space<vmem>>, %arg2: memref<1x32xf32, #tpu.memory_space<vmem>>, %arg3: memref<1xf32, #tpu.memory_space<smem>>, %arg4: memref<2x128xf32, #tpu.memory_space<vmem>>) attributes {dimension_semantics = [#tpu.dimension_semantics<parallel>], iteration_bounds = array<i64: 1>, scalar_prefetch = 0 : i64, scratch_operands = 0 : i64, tpu.core_type = #tpu.core_type<tc>, window_params = [{transform_indices = @transform_0, window_bounds = array<i64: 128, 32>}, {pipeline_mode = #tpu.pipeline_mode<synchronous>, transform_indices = @transform_1, window_bounds = array<i64: 1, 32>}, {transform_indices = @transform_2, window_bounds = array<i64: 1>}, {transform_indices = @transform_3, window_bounds = array<i64: 2, 128>}]} {
    %c0 = arith.constant 0 : index
    %c0_0 = arith.constant 0 : index
    %0 = vector.load %arg2[%c0, %c0_0] : memref<1x32xf32, #tpu.memory_space<vmem>>, vector<1x32xf32>
    %c0_1 = arith.constant 0 : index
    %c0_2 = arith.constant 0 : index
    %1 = vector.load %arg1[%c0_1, %c0_2] : memref<128x32xf32, #tpu.memory_space<vmem>>, vector<128x32xf32>
    %cst = arith.constant dense<0.000000e+00> : vector<1x128xf32>
    %2 = tpu.matmul %0, %1, %cst {dimension_numbers = #tpu.dot_dimension_numbers<[1], [1], [0], [0], [0, 0, 1, 0], [], []>} : vector<1x32xf32>, vector<128x32xf32>, vector<1x128xf32> -> vector<1x128xf32>
    %c0_3 = arith.constant 0 : index
    %3 = memref.load %arg3[%c0_3] : memref<1xf32, #tpu.memory_space<smem>>
    %4 = vector.broadcast %3 : f32 to vector<1x128xf32>
    %5 = arith.addf %2, %4 : vector<1x128xf32>
    %cst_4 = arith.constant 0.000000e+00 : f32
    %6 = vector.broadcast %cst_4 : f32 to vector<1x128xf32>
    %7 = arith.subf %6, %5 : vector<1x128xf32>
    %8 = math.exp %7 : vector<1x128xf32>
    %cst_5 = arith.constant 1.000000e+00 : f32
    %9 = vector.broadcast %cst_5 : f32 to vector<1x128xf32>
    %10 = arith.addf %9, %8 : vector<1x128xf32>
    %11 = tpu.reciprocal %10 : vector<1x128xf32> -> vector<1x128xf32>
    %cst_6 = arith.constant 1.000000e+00 : f32
    %12 = vector.broadcast %cst_6 : f32 to vector<1x128xf32>
    %13 = arith.subf %12, %11 : vector<1x128xf32>
    %14 = tpu.concatenate %11, %13 in 0 : vector<1x128xf32>, vector<1x128xf32> -> vector<2x128xf32>
    %c0_7 = arith.constant 0 : index
    %c0_8 = arith.constant 0 : index
    %15 = vector.load %arg4[%c0_7, %c0_8] : memref<2x128xf32, #tpu.memory_space<vmem>>, vector<2x128xf32>
    tpu.vector_store %arg4[%c0_7, %c0_8], %14 {strides = array<i32>} : memref<2x128xf32, #tpu.memory_space<vmem>>, vector<2x128xf32>,
    return
  }
  func.func @transform_0(%arg0: i32) -> (i32, i32) {
    %c0_i32 = arith.constant 0 : i32
    %c0_i32_0 = arith.constant 0 : i32
    return %arg0, %c0_i32 : i32, i32
  }
  func.func @transform_1(%arg0: i32) -> (i32, i32) {
    %c0_i32 = arith.constant 0 : i32
    %c0_i32_0 = arith.constant 0 : i32
    %c0_i32_1 = arith.constant 0 : i32
    return %c0_i32, %c0_i32_0 : i32, i32
  }
  func.func @transform_2(%arg0: i32) -> i32 {
    %c0_i32 = arith.constant 0 : i32
    %c0_i32_0 = arith.constant 0 : i32
    return %c0_i32 : i32
  }
  func.func @transform_3(%arg0: i32) -> (i32, i32) {
    %c0_i32 = arith.constant 0 : i32
    %c0_i32_0 = arith.constant 0 : i32
    return %c0_i32, %arg0 : i32, i32
  }
}

</mosaic_0001>

<llo_original>
// kernel: tpu_custom_call.1
$region0: #{tpu_custom_call.1}
  #allocation0 [shape = 'u32[]', space=smem, size = 0x4, offset = 0x4, fixed_abs, tag = 'smem constant byte address 0x4 - core index']
  #allocation1 [shape = 'u32[144,128]{1,0:T(1,128)}', space=vmem, size = 0x12000, scoped, tag = 'internal scratch']
  #allocation2 [shape = 'f32[1]{0:T(128)S(6)}', space=smem, size = 0x200, scoped, tag = 'scoped memory for tpu_custom_call.1']
  %s0 = inlined_call_operand.hbm [shape: f32[16,32], index: 0, kind: input, shape index: {}]
  %s1 = inlined_call_operand.vmem [shape: f32[1,32], index: 1, kind: input, shape index: {}]
  %s2 = inlined_call_operand.<no memory space> [shape: f32[1], index: 2, kind: input, shape index: {}]
  %s3 = inlined_call_operand.hbm [shape: f32[2,16], index: 3, kind: output, shape index: {}]
  %s4 = sld [smem:[#allocation0]]
  $region26: #{tpu_custom_call.1} parent=0
    _
  %s6 = ssub.s32 1, %s4
  %s7 = scalar_select 0, %s6, %s4
  %8 = sst [smem:[#allocation2]] %s2
  $region1: #{tpu_custom_call.1} parent=0
    #allocation3 [shape = 'u8[65536]{0}', space=vmem, size = 0x10000, scoped, tag = 'input window, operand 0, single buffered']
    #allocation4 [shape = 's32[1]{0}', space=sflag, size = 0x4, scoped, tag = 'scoped memory for tpu_custom_call.1']
    #allocation5 [shape = 's32[1]{0}', space=sflag, size = 0x4, scoped, tag = 'scoped memory for tpu_custom_call.1']
    #allocation6 [shape = 'u8[1024]{0}', space=vmem, size = 0x400, scoped, tag = 'output window, operand 0, single buffered']
    %9 = vsyncpa [#allocation4], 0
    %10 = vsyncpa [#allocation5], 0
    // Predicated region
    $region2: #{tpu_custom_call.1} parent=1 // pred_check
      _
    $region3: #{tpu_custom_call.1} parent=1 // pred_check_branch
      %12 = sbr.rel (0) target = $region5
    $region4: #{tpu_custom_call.1} parent=1 // pred_region
      %s14 = ssub.s32 2048, 256
      %15 = vsyncadd [#allocation4], %s14
      %s16 = sshll.u32 [#allocation3], 4
      %s17 = int_to_ptr.vmem [resolvable:$true] %s16
      %22 = dma.hbm_to_vmem [thread:$0]  %s0, 256, %s17, [#allocation4], 128, 128, 8
    $region5: #{tpu_custom_call.1} parent=1 // pred_fallthru
      _
    // Predicated region
    $region6: #{tpu_custom_call.1} parent=1 // pred_check
      _
    $region7: #{tpu_custom_call.1} parent=1 // pred_check_branch
      %24 = sbr.rel (0) target = $region9
    $region8: #{tpu_custom_call.1} parent=1 // pred_region
      _
    $region9: #{tpu_custom_call.1} parent=1 // pred_fallthru
      _
    // Predicated region
    $region10: #{tpu_custom_call.1} parent=1 // pred_check
      _
    $region11: #{tpu_custom_call.1} parent=1 // pred_check_branch
      %26 = sbr.rel (0) target = $region13
    $region12: #{tpu_custom_call.1} parent=1 // pred_region
      _
    $region13: #{tpu_custom_call.1} parent=1 // pred_fallthru
      _
    // Predicated region
    $region14: #{tpu_custom_call.1} parent=1 // pred_check
      _
    $region15: #{tpu_custom_call.1} parent=1 // pred_check_branch
      %28 = sbr.rel (0) target = $region17
    $region16: #{tpu_custom_call.1} parent=1 // pred_region
      %29 = dma.done [#allocation4], 2048
    $region17: #{tpu_custom_call.1} parent=1 // pred_fallthru
      _
    %v30 = vld [vmem:[%s1] sm:$0x1]
    %v31 = vld [vmem:[#allocation3] sm:$0xff]
    %v32 = vld [vmem:[#allocation3 + $0x8] sm:$0xff]
    %v33 = vld [vmem:[#allocation3 + $0x10] sm:$0xff]
    %v34 = vld [vmem:[#allocation3 + $0x18] sm:$0xff]
    %v35 = vld [vmem:[#allocation3 + $0x20] sm:$0xff]
    %v36 = vld [vmem:[#allocation3 + $0x28] sm:$0xff]
    %v37 = vld [vmem:[#allocation3 + $0x30] sm:$0xff]
    %v38 = vld [vmem:[#allocation3 + $0x38] sm:$0xff]
    %v39 = vld [vmem:[#allocation3 + $0x40] sm:$0xff]
    %v40 = vld [vmem:[#allocation3 + $0x48] sm:$0xff]
    %v41 = vld [vmem:[#allocation3 + $0x50] sm:$0xff]
    %v42 = vld [vmem:[#allocation3 + $0x58] sm:$0xff]
    %v43 = vld [vmem:[#allocation3 + $0x60] sm:$0xff]
    %v44 = vld [vmem:[#allocation3 + $0x68] sm:$0xff]
    %v45 = vld [vmem:[#allocation3 + $0x70] sm:$0xff]
    %v46 = vld [vmem:[#allocation3 + $0x78] sm:$0xff]
    %s47 = sld [smem:[#allocation2]]
    %v48 = vstv %s47
    %vm49 = vcmask 261120
    %v51 = vsel %vm49, %v30, 0
    %v54 = vsel %vm49, %v31, 0
    %v57 = vsel %vm49, %v32, 0
    %v60 = vsel %vm49, %v33, 0
    %v63 = vsel %vm49, %v34, 0
    %v66 = vsel %vm49, %v35, 0
    %v69 = vsel %vm49, %v36, 0
    %v72 = vsel %vm49, %v37, 0
    %v75 = vsel %vm49, %v38, 0
    %v78 = vsel %vm49, %v39, 0
    %v81 = vsel %vm49, %v40, 0
    %v84 = vsel %vm49, %v41, 0
    %v87 = vsel %vm49, %v42, 0
    %v90 = vsel %vm49, %v43, 0
    %v93 = vsel %vm49, %v44, 0
    %v96 = vsel %vm49, %v45, 0
    %v99 = vsel %vm49, %v46, 0
    %101 = vmatprep.subr.mxu0 0.0
    %102 = vmatpush1.xpose.msra.mxu0 %v54
    %103 = vmatprep.subr.mxu0 0.0
    %104 = vmatpush1.xpose.msra.mxu0 %v57
    %105 = vmatprep.subr.mxu0 0.0
    %106 = vmatpush1.xpose.msra.mxu0 %v60
    %107 = vmatprep.subr.mxu0 0.0
    %108 = vmatpush1.xpose.msra.mxu0 %v63
    %109 = vmatprep.subr.mxu0 0.0
    %110 = vmatpush1.xpose.msra.mxu0 %v66
    %111 = vmatprep.subr.mxu0 0.0
    %112 = vmatpush1.xpose.msra.mxu0 %v69
    %113 = vmatprep.subr.mxu0 0.0
    %114 = vmatpush1.xpose.msra.mxu0 %v72
    %115 = vmatprep.subr.mxu0 0.0
    %116 = vmatpush1.xpose.msra.mxu0 %v75
    %117 = vmatprep.subr.mxu0 0.0
    %118 = vmatpush1.xpose.msra.mxu0 %v78
    %119 = vmatprep.subr.mxu0 0.0
    %120 = vmatpush1.xpose.msra.mxu0 %v81
    %121 = vmatprep.subr.mxu0 0.0
    %122 = vmatpush1.xpose.msra.mxu0 %v84
    %123 = vmatprep.subr.mxu0 0.0
    %124 = vmatpush1.xpose.msra.mxu0 %v87
    %125 = vmatprep.subr.mxu0 0.0
    %126 = vmatpush1.xpose.msra.mxu0 %v90
    %127 = vmatprep.subr.mxu0 0.0
    %128 = vmatpush1.xpose.msra.mxu0 %v93
    %129 = vmatprep.subr.mxu0 0.0
    %130 = vmatpush1.xpose.msra.mxu0 %v96
    %131 = vmatprep.subr.mxu0 0.0
    %132 = vmatpush1.xpose.msra.mxu0 %v99
    %133 = vmatprep.subr.mxu0 0.0
    %134 = vmatpush1.xpose.msra.mxu0 0.0
    %135 = vmatprep.subr.mxu0 0.0
    %136 = vmatpush1.xpose.msra.mxu0 0.0
    %137 = vmatprep.subr.mxu0 0.0
    %138 = vmatpush1.xpose.msra.mxu0 0.0
    %139 = vmatprep.subr.mxu0 0.0
    %140 = vmatpush1.xpose.msra.mxu0 0.0
    %141 = vmatprep.subr.mxu0 0.0
    %142 = vmatpush1.xpose.msra.mxu0 0.0
    %143 = vmatprep.subr.mxu0 0.0
    %144 = vmatpush1.xpose.msra.mxu0 0.0
    %145 = vmatprep.subr.mxu0 0.0
    %146 = vmatpush1.xpose.msra.mxu0 0.0
    %147 = vmatprep.subr.mxu0 0.0
    %148 = vmatpush1.xpose.msra.mxu0 0.0
    %149 = vmatprep.subr.mxu0 0.0
    %150 = vmatpush1.xpose.msra.mxu0 0.0
    %151 = vmatprep.subr.mxu0 0.0
    %152 = vmatpush1.xpose.msra.mxu0 0.0
    %153 = vmatprep.subr.mxu0 0.0
    %154 = vmatpush1.xpose.msra.mxu0 0.0
    %155 = vmatprep.subr.mxu0 0.0
    %156 = vmatpush1.xpose.msra.mxu0 0.0
    %157 = vmatprep.subr.mxu0 0.0
    %158 = vmatpush1.xpose.msra.mxu0 0.0
    %159 = vmatprep.subr.mxu0 0.0
    %160 = vmatpush1.xpose.msra.mxu0 0.0
    %161 = vmatprep.subr.mxu0 0.0
    %162 = vmatpush1.xpose.msra.mxu0 0.0
    %163 = vmatprep.subr.mxu0 0.0
    %164 = vmatpush1.xpose.msra.mxu0 0.0
    %165 = vmatprep.mubr.f32.mxu0 0.0
    %166 = vmatmul.mubr.f32.gmra.mrb[0].mxu0 %v51
    %v167 = vpop.f32.mrb[0].mxu0
    %v168 = vadd.f32 %v48, %v167
    %v169 = vpop.f32.mrb[0].mxu0
    %170 = vdwg.mxu0
    %v171 = vsub.f32 0.0, %v168
    %v172 = vmul.f32 %v171, 1.442695
    %v173 = vpow.pop %v172
    %v174 = vadd.f32 %v173, 1.0
    %v175 = vrcp.pop %v174
    %v176 = vsub.f32 1.0, %v175
    %v178 = vrot.slane %v176, 7
    %vm180 = vcmask 1040384
    %v181 = vsel %vm180, %v175, %v178
    %182 = vst [vmem:[#allocation6] sm:$0x3] %v181
    // Predicated region
    $region18: #{tpu_custom_call.1} parent=1 // pred_check
      _
    $region19: #{tpu_custom_call.1} parent=1 // pred_check_branch
      %184 = sbr.rel (0) target = $region21
    $region20: #{tpu_custom_call.1} parent=1 // pred_region
      %s186 = ssub.s32 32, 32
      %187 = vsyncadd [#allocation5], %s186
      %s189 = sshll.u32 [#allocation6], 4
      %s190 = int_to_ptr.vmem [resolvable:$true] %s189
      %192 = dma.vmem_to_hbm [thread:$0]  %s190, 32, %s3, [#allocation5]
    $region21: #{tpu_custom_call.1} parent=1 // pred_fallthru
      _
    // Predicated region
    $region22: #{tpu_custom_call.1} parent=1 // pred_check
      _
    $region23: #{tpu_custom_call.1} parent=1 // pred_check_branch
      %194 = sbr.rel (0) target = $region25
    $region24: #{tpu_custom_call.1} parent=1 // pred_region
      %195 = dma.done [#allocation5], 32
    $region25: #{tpu_custom_call.1} parent=1 // pred_fallthru
      _
    %196 = vsyncpa [#allocation4], 1
    %197 = vsyncpa [#allocation5], 1

</llo_original>
